<compile_context>
chip_gen: v6e
topology: v6e:2x2x1
jax: 0.10.0
libtpu: 0.0.40
codegen_flags: <defaults>
</compile_context>

<pallas_src>
import functools
import numpy as np

import jax
import jax.numpy as jnp
from jax.experimental import pallas as pl
from jax.experimental.pallas import tpu as pltpu


def _round_up(x, m):
    return -(-x // m) * m


# ------------------------------ Pallas kernel ------------------------------- #

def _conv_block_kernel(x_ref, w_ref, ba_ref, o_ref, *scratch,
                       taps, tn, cin_pad, mode):
    """One (batch, spatial-tile) grid point.

    x_ref : (P, Cin_pad, npad)  phase-decomposed, flattened, zero-padded input
    w_ref : mode 'direct'/'stack' -> (Cout, KK*Cin_pad)  (BN scale folded in)
            mode 'dense'          -> (KK, Cout, Cin_pad)
            mode 'dw'             -> (KK, C, 1)
    ba_ref: (2, Cout, 1)  [0]=folded BN bias, [1]=PReLU slope
    o_ref : (1, Cout, Tn)
    taps  : static tuple of (phase_index, flat_offset) per kernel tap
    """
    t = pl.program_id(1)
    base = pl.multiple_of(t * tn, tn)                   # tn is a multiple of 128

    if mode == "direct":                                # 1x1 conv: single MXU dot
        p, off = taps[0]
        y = jnp.dot(w_ref[...], x_ref[p, :, pl.ds(base + off, tn)],
                    preferred_element_type=jnp.float32)

    elif mode == "stack":                               # fold taps into contraction
        xs_ref, = scratch                               # (KK*Cin_pad, Tn)
        for k, (p, off) in enumerate(taps):             # static unroll
            xs_ref[k * cin_pad:(k + 1) * cin_pad, :] = (
                x_ref[p, :, pl.ds(base + off, tn)])
        y = jnp.dot(w_ref[...], xs_ref[...],
                    preferred_element_type=jnp.float32)

    elif mode == "dense":                               # Cin >= 128: per-tap dots
        acc_ref, = scratch                              # (Cout, Tn) f32
        for k, (p, off) in enumerate(taps):
            contrib = jnp.dot(w_ref[k], x_ref[p, :, pl.ds(base + off, tn)],
                              preferred_element_type=jnp.float32)
            if k == 0:
                acc_ref[...] = contrib
            else:
                acc_ref[...] += contrib
        y = acc_ref[...]

    else:                                               # depthwise (VPU FMA)
        acc_ref, = scratch                              # (C, Tn) f32
        for k, (p, off) in enumerate(taps):
            win = x_ref[p, :, pl.ds(base + off, tn)].astype(jnp.float32)
            contrib = w_ref[k] * win
            if k == 0:
                acc_ref[...] = contrib
            else:
                acc_ref[...] += contrib
        y = acc_ref[...]

    y = y + ba_ref[0]                                   # folded BN bias
    y = jnp.where(y > 0, y, y * ba_ref[1])              # PReLU (per-channel slope)
    o_ref[0] = y.astype(o_ref.dtype)


# ------------------------------ host-side glue ------------------------------ #

def conv_block_forward(x, params, *, kernel=(1, 1), stride=(1, 1),
                       padding=(0, 0), groups=1,
                       matmul_dtype=jnp.bfloat16, out_dtype=jnp.bfloat16,
                       eps=1e-5, tile_n=1024):
    B, Cin, H, W = x.shape
    kh, kw = kernel
    sh, sw = stride
    ph, pw = padding
    KK = kh * kw

    Wt = params["w"]                                  # (Cout, Cin//groups, kh, kw)
    gamma, beta, mean, var = params["bn"]             # BatchNorm running stats
    alpha = params["a"]                               # PReLU slopes
    Cout = Wt.shape[0]

    depthwise = groups != 1
    if depthwise:
        assert groups == Cin == Cout, "only groups==1 or full depthwise supported"

    # ------------------- output / phase-decomposition geometry ---------------
    Ho = (H + 2 * ph - kh) // sh + 1
    Wo = (W + 2 * pw - kw) // sw + 1
    dh_max, dw_max = (kh - 1) // sh, (kw - 1) // sw
    Ha = max(Ho + dh_max, -(-(H + ph) // sh))
    Wa = max(Wo + dw_max, -(-(W + pw) // sw))
    P = sh * sw
    max_off = dh_max * Wa + dw_max

    nwin = Ho * Wa                                    # useful flat output width
    tile_n = _round_up(tile_n, 128)
    tn = min(tile_n, _round_up(nwin, 128))            # lane-dense tile width
    nwin_pad = _round_up(nwin, tn)                    # padded (lane-dense) output
    num_tiles = nwin_pad // tn
    npad = _round_up(max(nwin_pad + max_off, Ha * Wa), 128)

    cin_pad = Cin if depthwise else _round_up(Cin, 8)  # sublane-aligned contraction

    # ------------- fold BatchNorm (eval mode) into weights / bias ------------
    scale = gamma / jnp.sqrt(var + eps)                        # (Cout,)
    bias = (beta - mean * scale).reshape(Cout, 1)
    ba = jnp.stack([bias, alpha.reshape(Cout, 1)]).astype(jnp.float32)  # (2,Cout,1)

    if depthwise:
        mode = "dw"
        wf = (Wt[:, 0, :, :] * scale[:, None, None])           # (C, kh, kw)
        wf = wf.reshape(Cout, KK).T.reshape(KK, Cout, 1).astype(jnp.float32)
    else:
        wdense = Wt * scale[:, None, None, None]               # (Cout, Cin, kh, kw)
        if KK == 1:
            mode = "direct"
            wf = jnp.pad(wdense[:, :, 0, 0], ((0, 0), (0, cin_pad - Cin)))
            wf = wf.astype(matmul_dtype)                        # (Cout, Cin_pad)
        elif cin_pad < 128:
            mode = "stack"                                      # fold taps into K
            wf = wdense.transpose(0, 2, 3, 1)                   # (Cout, kh, kw, Cin)
            wf = jnp.pad(wf, ((0, 0), (0, 0), (0, 0), (0, cin_pad - Cin)))
            wf = wf.reshape(Cout, KK * cin_pad).astype(matmul_dtype)
        else:
            mode = "dense"                                      # per-tap dots
            wf = wdense.transpose(2, 3, 0, 1).reshape(KK, Cout, Cin)
            wf = jnp.pad(wf, ((0, 0), (0, 0), (0, cin_pad - Cin)))
            wf = wf.astype(matmul_dtype)

    # ------- phase-decompose + flatten the zero-padded input (no NHWC) -------
    xpad = jnp.pad(x, ((0, 0), (0, cin_pad - Cin),
                       (ph, Ha * sh - H - ph), (pw, Wa * sw - W - pw)))
    xph = xpad.reshape(B, cin_pad, Ha, sh, Wa, sw).transpose(0, 3, 5, 1, 2, 4)
    xf = xph.reshape(B, P, cin_pad, Ha * Wa)
    xf = jnp.pad(xf, ((0, 0), (0, 0), (0, 0), (0, npad - Ha * Wa)))
    xf = xf.reshape(B * P, cin_pad, npad).astype(matmul_dtype)  # bf16 in HBM

    # static tap table: tap (ih, iw) -> (phase index, flat offset within phase)
    taps = tuple(((ih % sh) * sw + (iw % sw), (ih // sh) * Wa + (iw // sw))
                 for ih in range(kh) for iw in range(kw))

    if mode == "stack":
        scratch_shapes = [pltpu.VMEM((KK * cin_pad, tn), matmul_dtype)]
    elif mode in ("dense", "dw"):
        scratch_shapes = [pltpu.VMEM((Cout, tn), jnp.float32)]
    else:
        scratch_shapes = []

    flops = 2 * B * KK * Cout * Ho * Wo * (1 if depthwise else Cin)
    bytes_accessed = int(
        xf.size * jnp.dtype(xf.dtype).itemsize
        + wf.size * jnp.dtype(wf.dtype).itemsize
        + ba.size * 4
        + B * Cout * nwin_pad * jnp.dtype(out_dtype).itemsize)

    out_flat = pl.pallas_call(
        functools.partial(_conv_block_kernel, taps=taps, tn=tn,
                          cin_pad=cin_pad, mode=mode),
        out_shape=jax.ShapeDtypeStruct((B, Cout, nwin_pad), out_dtype),
        grid=(B, num_tiles),
        in_specs=[
            pl.BlockSpec((P, cin_pad, npad), lambda b, t: (b, 0, 0)),
            pl.BlockSpec(wf.shape, lambda b, t: (0,) * wf.ndim),   # resident
            pl.BlockSpec((2, Cout, 1), lambda b, t: (0, 0, 0)),    # bias + slope
        ],
        out_specs=pl.BlockSpec((1, Cout, tn), lambda b, t: (b, 0, t)),
        scratch_shapes=scratch_shapes,
        compiler_params=pltpu.CompilerParams(
            dimension_semantics=("parallel", "parallel")),
        cost_estimate=pl.CostEstimate(flops=flops, transcendentals=0,
                                      bytes_accessed=bytes_accessed),
    )(xf, wf, ba)

    # NCHW out: drop lane padding, free reshape, one cheap width slice.
    out = out_flat[:, :, :nwin].reshape(B, Cout, Ho, Wa)[:, :, :, :Wo]
    return out


# ------------------------ pure-JAX reference (for check) -------------------- #

def conv_block_reference(x, params, *, kernel=(1, 1), stride=(1, 1),
                         padding=(0, 0), groups=1, eps=1e-5):
    del kernel  # implied by weight shape
    y = jax.lax.conv_general_dilated(
        x, params["w"], window_strides=stride,
        padding=[(padding[0], padding[0]), (padding[1], padding[1])],
        feature_group_count=groups,
        dimension_numbers=("NCHW", "OIHW", "NCHW"),
        precision=jax.lax.Precision.HIGHEST)
    gamma, beta, mean, var = params["bn"]
    s = gamma / jnp.sqrt(var + eps)
    y = y * s[None, :, None, None] + (beta - mean * s)[None, :, None, None]
    a = params["a"]
    return jnp.where(y > 0, y, y * a[None, :, None, None])


# ----------------------------- parameter init ------------------------------- #

def make_params(in_c, out_c, kernel, groups, key):
    k1, k2, k3 = jax.random.split(key, 3)
    kb = jax.random.split(k2, 4)
    w = 0.3 * jax.random.normal(
        k1, (out_c, in_c // groups, kernel[0], kernel[1]), jnp.float32)
    gamma = 1.0 + 0.1 * jax.random.normal(kb[0], (out_c,), jnp.float32)
    beta = 0.1 * jax.random.normal(kb[1], (out_c,), jnp.float32)
    mean = 0.1 * jax.random.normal(kb[2], (out_c,), jnp.float32)
    var = 0.5 + 0.2 * jnp.abs(jax.random.normal(kb[3], (out_c,), jnp.float32))
    a = 0.25 + 0.05 * jax.random.normal(k3, (out_c,), jnp.float32)
    return {"w": w, "bn": (gamma, beta, mean, var), "a": a}


def _check(out, ref, rtol, atol):
    np.testing.assert_allclose(np.asarray(out.astype(jnp.float32)),
                               np.asarray(ref), rtol=rtol, atol=atol)


# ---------------------------------- main ------------------------------------ #

if __name__ == "__main__":
    key = jax.random.PRNGKey(0)
    kx, kx2, kx3, kp1, kp2, kp3, kp4, kp5 = jax.random.split(key, 8)

    F32 = dict(matmul_dtype=jnp.float32, out_dtype=jnp.float32)

    B, Cin, H, W = 2, 4, 16, 16
    x = jax.random.normal(kx, (B, Cin, H, W), jnp.float32)

    # 1) module defaults: 1x1 conv ("direct" MXU path); tile_n=128 -> 2 spatial tiles
    cfg1 = dict(kernel=(1, 1), stride=(1, 1), padding=(0, 0), groups=1)
    p1 = make_params(Cin, 8, (1, 1), 1, kp1)
    ref1 = conv_block_reference(x, p1, **cfg1)
    out1 = jax.block_until_ready(conv_block_forward(x, p1, tile_n=128, **cfg1, **F32))
    _check(out1, ref1, 2e-3, 2e-3)

    # 2) stem-style: 3x3, stride 2, pad 1, groups=1 ("stack" path: taps folded into K)
    cfg2 = dict(kernel=(3, 3), stride=(2, 2), padding=(1, 1), groups=1)
    p2 = make_params(Cin, 8, (3, 3), 1, kp2)
    ref2 = conv_block_reference(x, p2, **cfg2)
    out2 = jax.block_until_ready(conv_block_forward(x, p2, **cfg2, **F32))
    _check(out2, ref2, 2e-3, 2e-3)
    # 2b) same conv with default bf16 operands / bf16 output (v5e/v6e/v7x fast path)
    out2b = jax.block_until_ready(conv_block_forward(x, p2, **cfg2))
    _check(out2b, ref2, 6e-2, 6e-2)

    # 3) depthwise: 3x3, stride 1, pad 1; tile_n=128 -> 3 spatial tiles
    Cdw = 8
    xdw = jax.random.normal(kx2, (B, Cdw, H, W), jnp.float32)
    cfg3 = dict(kernel=(3, 3), stride=(1, 1), padding=(1, 1), groups=Cdw)
    p3 = make_params(Cdw, Cdw, (3, 3), Cdw, kp3)
    ref3 = conv_block_reference(xdw, p3, **cfg3)
    out3 = jax.block_until_ready(conv_block_forward(xdw, p3, tile_n=128, **cfg3, **F32))
    _check(out3, ref3, 2e-3, 2e-3)
    # 3b) bf16 input in HBM (f32 compute in-kernel), bf16 output
    out3b = jax.block_until_ready(conv_block_forward(xdw, p3, **cfg3))
    _check(out3b, ref3, 5e-2, 5e-2)

    # 4) depthwise with stride 2 (exercises the phase-decomposed strided path)
    cfg4 = dict(kernel=(3, 3), stride=(2, 2), padding=(1, 1), groups=Cdw)
    p4 = make_params(Cdw, Cdw, (3, 3), Cdw, kp4)
    ref4 = conv_block_reference(xdw, p4, **cfg4)
    out4 = jax.block_until_ready(conv_block_forward(xdw, p4, **cfg4, **F32))
    _check(out4, ref4, 2e-3, 2e-3)

    # 5) wide-channel dense conv (Cin >= 128 -> per-tap "dense" path w/ f32 acc scratch)
    Cw = 128
    xw = jax.random.normal(kx3, (B, Cw, 8, 8), jnp.float32)
    cfg5 = dict(kernel=(3, 3), stride=(1, 1), padding=(1, 1), groups=1)
    p5 = make_params(Cw, 8, (3, 3), 1, kp5)
    ref5 = conv_block_reference(xw, p5, **cfg5)
    out5 = jax.block_until_ready(conv_block_forward(xw, p5, **cfg5, **F32))
    _check(out5, ref5, 2e-3, 2e-3)

    print("KERNEL_OK")
</pallas_src>

<mosaic_0001>
module attributes {stable_mosaic.version = 11 : i64} {
  func.func @_conv_block_kernel(%arg0: i32, %arg1: i32, %arg2: memref<1x8x256xf32, #tpu.memory_space<vmem>>, %arg3: memref<8x8xf32, #tpu.memory_space<vmem>>, %arg4: memref<2x8x1xf32, #tpu.memory_space<vmem>>, %arg5: memref<1x8x128xf32, #tpu.memory_space<vmem>>) attributes {dimension_semantics = [#tpu.dimension_semantics<parallel>, #tpu.dimension_semantics<parallel>], iteration_bounds = array<i64: 2, 2>, scalar_prefetch = 0 : i64, scratch_operands = 0 : i64, tpu.core_type = #tpu.core_type<tc>, window_params = [{transform_indices = @transform_0, window_bounds = array<i64: 1, 8, 256>}, {pipeline_mode = #tpu.pipeline_mode<synchronous>, transform_indices = @transform_1, window_bounds = array<i64: 8, 8>}, {pipeline_mode = #tpu.pipeline_mode<synchronous>, transform_indices = @transform_2, window_bounds = array<i64: 2, 8, 1>}, {transform_indices = @transform_3, window_bounds = array<i64: 1, 8, 128>}]} {
    %c128_i32 = arith.constant 128 : i32
    %0 = arith.muli %arg1, %c128_i32 : i32
    %1 = tpu.assume_multiple %0, 128 : i32
    %c0 = arith.constant 0 : index
    %c0_0 = arith.constant 0 : index
    %2 = vector.load %arg3[%c0, %c0_0] : memref<8x8xf32, #tpu.memory_space<vmem>>, vector<8x8xf32>
    %c0_i32 = arith.constant 0 : i32
    %3 = arith.addi %1, %c0_i32 : i32
    %c0_1 = arith.constant 0 : index
    %c0_2 = arith.constant 0 : index
    %4 = arith.index_cast %3 : i32 to index
    %5 = vector.load %arg2[%c0_1, %c0_2, %4] : memref<1x8x256xf32, #tpu.memory_space<vmem>>, vector<1x8x128xf32>
    %6 = vector.shape_cast %5 : vector<1x8x128xf32> to vector<8x128xf32>
    %cst = arith.constant dense<0.000000e+00> : vector<8x128xf32>
    %7 = tpu.matmul %2, %6, %cst {dimension_numbers = #tpu.dot_dimension_numbers<[1], [0], [0], [1], [0, 0, 1, 1], [], []>} : vector<8x8xf32>, vector<8x128xf32>, vector<8x128xf32> -> vector<8x128xf32>
    %c0_3 = arith.constant 0 : index
    %c0_4 = arith.constant 0 : index
    %c0_5 = arith.constant 0 : index
    %8 = vector.load %arg4[%c0_3, %c0_4, %c0_5] : memref<2x8x1xf32, #tpu.memory_space<vmem>>, vector<1x8x1xf32>
    %9 = vector.shape_cast %8 : vector<1x8x1xf32> to vector<8x1xf32>
    %10 = vector.broadcast %9 : vector<8x1xf32> to vector<8x128xf32>
    %11 = arith.addf %7, %10 : vector<8x128xf32>
    %cst_6 = arith.constant 0.000000e+00 : f32
    %12 = vector.broadcast %cst_6 : f32 to vector<8x128xf32>
    %13 = arith.cmpf ogt, %11, %12 : vector<8x128xf32>
    %c1 = arith.constant 1 : index
    %c0_7 = arith.constant 0 : index
    %c0_8 = arith.constant 0 : index
    %14 = vector.load %arg4[%c1, %c0_7, %c0_8] : memref<2x8x1xf32, #tpu.memory_space<vmem>>, vector<1x8x1xf32>
    %15 = vector.shape_cast %14 : vector<1x8x1xf32> to vector<8x1xf32>
    %16 = vector.broadcast %15 : vector<8x1xf32> to vector<8x128xf32>
    %17 = arith.mulf %11, %16 : vector<8x128xf32>
    %18 = arith.select %13, %11, %17 : vector<8x128xi1>, vector<8x128xf32>
    %c0_9 = arith.constant 0 : index
    %c0_10 = arith.constant 0 : index
    %c0_11 = arith.constant 0 : index
    %19 = vector.load %arg5[%c0_9, %c0_10, %c0_11] : memref<1x8x128xf32, #tpu.memory_space<vmem>>, vector<1x8x128xf32>
    %20 = vector.shape_cast %19 : vector<1x8x128xf32> to vector<8x128xf32>
    %21 = vector.shape_cast %18 : vector<8x128xf32> to vector<1x8x128xf32>
    tpu.vector_store %arg5[%c0_9, %c0_10, %c0_11], %21 {strides = array<i32>} : memref<1x8x128xf32, #tpu.memory_space<vmem>>, vector<1x8x128xf32>,
    return
  }
  func.func @transform_0(%arg0: i32, %arg1: i32) -> (i32, i32, i32) {
    %c0_i32 = arith.constant 0 : i32
    %c0_i32_0 = arith.constant 0 : i32
    %c0_i32_1 = arith.constant 0 : i32
    return %arg0, %c0_i32, %c0_i32_0 : i32, i32, i32
  }
  func.func @transform_1(%arg0: i32, %arg1: i32) -> (i32, i32) {
    %c0_i32 = arith.constant 0 : i32
    %c0_i32_0 = arith.constant 0 : i32
    %c0_i32_1 = arith.constant 0 : i32
    return %c0_i32, %c0_i32_0 : i32, i32
  }
  func.func @transform_2(%arg0: i32, %arg1: i32) -> (i32, i32, i32) {
    %c0_i32 = arith.constant 0 : i32
    %c0_i32_0 = arith.constant 0 : i32
    %c0_i32_1 = arith.constant 0 : i32
    %c0_i32_2 = arith.constant 0 : i32
    return %c0_i32, %c0_i32_0, %c0_i32_1 : i32, i32, i32
  }
  func.func @transform_3(%arg0: i32, %arg1: i32) -> (i32, i32, i32) {
    %c0_i32 = arith.constant 0 : i32
    %c0_i32_0 = arith.constant 0 : i32
    return %arg0, %c0_i32, %arg1 : i32, i32, i32
  }
}

</mosaic_0001>

<llo_original>
// kernel: tpu_custom_call.1
$region0: #{tpu_custom_call.1}
  #allocation0 [shape = 'u32[]', space=smem, size = 0x4, offset = 0x4, fixed_abs, tag = 'smem constant byte address 0x4 - core index']
  #allocation1 [shape = 'u32[144,128]{1,0:T(1,128)}', space=vmem, size = 0x12000, scoped, tag = 'internal scratch']
  %s0 = inlined_call_operand.hbm [shape: f32[2,8,256], index: 0, kind: input, shape index: {}]
  %s1 = inlined_call_operand.vmem [shape: f32[8,8], index: 1, kind: input, shape index: {}]
  %s2 = inlined_call_operand.vmem [shape: f32[2,8,1], index: 2, kind: input, shape index: {}]
  %s3 = inlined_call_operand.hbm [shape: f32[2,8,256], index: 3, kind: output, shape index: {}]
  %s4 = sld [smem:[#allocation0]]
  $region49: #{tpu_custom_call.1} parent=0
    _
  %s6 = ssub.s32 1, %s4
  %s7 = scalar_select 0, %s6, %s4
  $region1: #{tpu_custom_call.1} parent=0
    #allocation2 [shape = 'u8[16384]{0}', space=vmem, size = 0x4000, scoped, tag = 'input window, operand 0']
    #allocation3 [shape = 's32[2]{0}', space=sflag, size = 0x8, scoped, tag = 'scoped memory for tpu_custom_call.1']
    #allocation4 [shape = 's32[2]{0}', space=sflag, size = 0x8, scoped, tag = 'scoped memory for tpu_custom_call.1']
    #allocation5 [shape = 'u8[8192]{0}', space=vmem, size = 0x2000, scoped, tag = 'output window, operand 0']
    %8 = vsyncpa [#allocation3], 0
    %s9 = scalar_lea.sflag [#allocation3], 1
    %10 = vsyncpa %s9, 0
    %11 = vsyncpa [#allocation4], 0
    %s12 = scalar_lea.sflag [#allocation4], 1
    %13 = vsyncpa %s12, 0
    loop: start=0, step=1, limit=6
    $region2: #{tpu_custom_call.1} parent=1 // loop_pre_header
      _
    $region3: #{tpu_custom_call.1} parent=1 // loop_header
      %s15 = sphi 0, %s19
      %p16 = scmp.ge.s32.totalorder %s15, 6
      %s22 = sphi 0, %s34
      %s23 = sphi 0, %s30
      %s24 = sphi 0, %s22
      %s25 = sphi 0, %s23
      %s26 = sphi 0, %s24
      %s27 = sphi 0, %s25
      %s37 = sphi 0, %s39
      %s40 = sphi 0, %s37
      %s41 = sphi 0, %s40
      %s57 = sphi 0, %s41
      %s61 = sphi 0, %s61
      %s63 = sphi 0, %s61
      %s64 = sphi 0, %s63
      %s78 = sphi 0, %s64
      %s82 = sphi 0, %s82
      %s84 = sphi 0, %s82
      %s85 = sphi 0, %s84
      %s99 = sphi 0, %s85
      %s107 = sphi 0, %s109
      %s110 = sphi 0, %s107
      %s111 = sphi 0, %s110
      %s127 = sphi 0, %s111
    $region4: #{tpu_custom_call.1} parent=1 // loop_header_branch
      %18 = sbr.rel (%p16) target = $region8
    $region5: #{tpu_custom_call.1} parent=1 // loop_body
      %s20 = ssub.s32 %s15, 1
      %s21 = ssub.s32 %s15, 2
      %s28 = sadd.s32 1, %s23
      %p29 = scmp.ge.s32.totalorder %s28, 2
      %s30 = scalar_select %p29, 0, %s28
      %s31 = sadd.s32 1, %s22
      %s32 = scalar_select %p29, %s31, %s22
      %p33 = scmp.ge.s32.totalorder %s32, 2
      %s34 = scalar_select %p33, 0, %s32
      %s35 = ssub.s32 %s22, %s34
      %p36 = scmp.eq.s32.totalorder %s35, 0
      %s38 = sadd.s32 %s37, 1
      %s39 = scalar_select %p36, %s37, %s38
      %p42 = pneg %p36
      %p43 = scmp.eq.s32.totalorder %s15, 3
      %p44 = por %p42, %p43
      %p45 = scmp.ne.s32.totalorder %s37, %s40
      %p46 = scmp.eq.s32.totalorder %s15, 0
      %p47 = por %p45, %p46
      %p48 = scmp.ne.s32.totalorder %s37, %s40
      %p49 = scmp.eq.s32.totalorder %s20, 3
      %p50 = por %p48, %p49
      %p51 = scmp.ne.s32.totalorder %s40, %s41
      %p52 = scmp.eq.s32.totalorder %s20, 0
      %p53 = por %p51, %p52
      %p54 = scmp.ne.s32.totalorder %s40, %s41
      %p55 = scmp.eq.s32.totalorder %s21, 3
      %p56 = por %p54, %p55
      %p58 = scmp.ne.s32.totalorder %s41, %s57
      %p59 = scmp.eq.s32.totalorder %s21, 0
      %p60 = por %p58, %p59
      %s62 = sadd.s32 %s61, 1
      %p65 = scmp.eq.s32.totalorder %s15, 3
      %p66 = scmp.ne.s32.totalorder %s61, %s63
      %p67 = scmp.eq.s32.totalorder %s15, 0
      %p68 = por %p66, %p67
      %p69 = scmp.ne.s32.totalorder %s61, %s63
      %p70 = scmp.eq.s32.totalorder %s20, 3
      %p71 = por %p69, %p70
      %p72 = scmp.ne.s32.totalorder %s63, %s64
      %p73 = scmp.eq.s32.totalorder %s20, 0
      %p74 = por %p72, %p73
      %p75 = scmp.ne.s32.totalorder %s63, %s64
      %p76 = scmp.eq.s32.totalorder %s21, 3
      %p77 = por %p75, %p76
      %p79 = scmp.ne.s32.totalorder %s64, %s78
      %p80 = scmp.eq.s32.totalorder %s21, 0
      %p81 = por %p79, %p80
      %s83 = sadd.s32 %s82, 1
      %p86 = scmp.eq.s32.totalorder %s15, 3
      %p87 = scmp.ne.s32.totalorder %s82, %s84
      %p88 = scmp.eq.s32.totalorder %s15, 0
      %p89 = por %p87, %p88
      %p90 = scmp.ne.s32.totalorder %s82, %s84
      %p91 = scmp.eq.s32.totalorder %s20, 3
      %p92 = por %p90, %p91
      %p93 = scmp.ne.s32.totalorder %s84, %s85
      %p94 = scmp.eq.s32.totalorder %s20, 0
      %p95 = por %p93, %p94
      %p96 = scmp.ne.s32.totalorder %s84, %s85
      %p97 = scmp.eq.s32.totalorder %s21, 3
      %p98 = por %p96, %p97
      %p100 = scmp.ne.s32.totalorder %s85, %s99
      %p101 = scmp.eq.s32.totalorder %s21, 0
      %p102 = por %p100, %p101
      %s103 = ssub.s32 %s22, %s34
      %s104 = ssub.s32 %s23, %s30
      %s105 = sor.u32 %s103, %s104
      %p106 = scmp.eq.s32.totalorder %s105, 0
      %s108 = sadd.s32 %s107, 1
      %s109 = scalar_select %p106, %s107, %s108
      %p112 = pneg %p106
      %p113 = scmp.eq.s32.totalorder %s15, 3
      %p114 = por %p112, %p113
      %p115 = scmp.ne.s32.totalorder %s107, %s110
      %p116 = scmp.eq.s32.totalorder %s15, 0
      %p117 = por %p115, %p116
      %p118 = scmp.ne.s32.totalorder %s107, %s110
      %p119 = scmp.eq.s32.totalorder %s20, 3
      %p120 = por %p118, %p119
      %p121 = scmp.ne.s32.totalorder %s110, %s111
      %p122 = scmp.eq.s32.totalorder %s20, 0
      %p123 = por %p121, %p122
      %p124 = scmp.ne.s32.totalorder %s110, %s111
      %p125 = scmp.eq.s32.totalorder %s21, 3
      %p126 = por %p124, %p125
      %p128 = scmp.ne.s32.totalorder %s111, %s127
      %p129 = scmp.eq.s32.totalorder %s21, 0
      %p130 = por %p128, %p129
      %p131 = scmp.le.s32.totalorder 1, %s15
      %p132 = scmp.lt.s32.totalorder %s15, 5
      %p133 = pnand %p131, %p132
      %p134 = pneg %p133
      // Predicated region
      $region9: #{tpu_custom_call.1} parent=5 // pred_check
        _
      $region10: #{tpu_custom_call.1} parent=5 // pred_check_branch
        %136 = sbr.rel (%p133) target = $region12
      $region11: #{tpu_custom_call.1} parent=5 // pred_region
        %s137 = ssub.s32 %s15, 1
        // Predicated region
        $region13: #{tpu_custom_call.1} parent=11 // pred_check
          %p138 = pneg %p74
        $region14: #{tpu_custom_call.1} parent=11 // pred_check_branch
          %140 = sbr.rel (%p138) target = $region16
        $region15: #{tpu_custom_call.1} parent=11 // pred_region
          _
        $region16: #{tpu_custom_call.1} parent=11 // pred_fallthru
          _
        // Predicated region
        $region17: #{tpu_custom_call.1} parent=11 // pred_check
          %p141 = pneg %p95
        $region18: #{tpu_custom_call.1} parent=11 // pred_check_branch
          %143 = sbr.rel (%p141) target = $region20
        $region19: #{tpu_custom_call.1} parent=11 // pred_region
          _
        $region20: #{tpu_custom_call.1} parent=11 // pred_fallthru
          _
      $region12: #{tpu_custom_call.1} parent=5 // pred_fallthru
        _
      %p144 = scmp.lt.s32.totalorder %s15, 4
      // Predicated region
      $region21: #{tpu_custom_call.1} parent=5 // pred_check
        %p145 = pneg %p144
      $region22: #{tpu_custom_call.1} parent=5 // pred_check_branch
        %147 = sbr.rel (%p145) target = $region24
      $region23: #{tpu_custom_call.1} parent=5 // pred_region
        // Predicated region
        $region25: #{tpu_custom_call.1} parent=23 // pred_check
          %p148 = pneg %p47
        $region26: #{tpu_custom_call.1} parent=23 // pred_check_branch
          %150 = sbr.rel (%p148) target = $region28
        $region27: #{tpu_custom_call.1} parent=23 // pred_region
          %s151 = sand.u32 %s37, 1
          %s152 = scalar_lea.sflag [#allocation3], %s151
          %s153 = sand.u32 %s37, 1
          %s154 = smul.addr %s153, 16
          %s155 = scalar_lea.vmem [#allocation2], %s154
          %s157 = ssub.s32 256, 256
          %158 = vsyncadd %s152, %s157
          %s159 = smul.addr %s22, 2
          %s160 = smul.addr %s159, 128
          %s161 = scalar_lea.hbm %s0, %s160
          %s163 = sshll.u32 %s155, 4
          %s164 = int_to_ptr.vmem [resolvable:$true] %s163
          %166 = dma.hbm_to_vmem [thread:$0]  %s161, 256, %s164, %s152
        $region28: #{tpu_custom_call.1} parent=23 // pred_fallthru
          _
      $region24: #{tpu_custom_call.1} parent=5 // pred_fallthru
        _
      %p167 = scmp.le.s32.totalorder 1, %s15
      %p168 = scmp.lt.s32.totalorder %s15, 5
      %p169 = pnand %p167, %p168
      %p170 = pneg %p169
      // Predicated region
      $region29: #{tpu_custom_call.1} parent=5 // pred_check
        _
      $region30: #{tpu_custom_call.1} parent=5 // pred_check_branch
        %172 = sbr.rel (%p169) target = $region32
      $region31: #{tpu_custom_call.1} parent=5 // pred_region
        %s173 = ssub.s32 %s15, 1
        %s174 = sand.u32 %s40, 1
        %s175 = scalar_lea.sflag [#allocation3], %s174
        %s176 = sand.u32 %s40, 1
        %s177 = smul.addr %s176, 16
        %s178 = scalar_lea.vmem [#allocation2], %s177
        // Predicated region
        $region33: #{tpu_custom_call.1} parent=31 // pred_check
          %p179 = pneg %p53
        $region34: #{tpu_custom_call.1} parent=31 // pred_check_branch
          %181 = sbr.rel (%p179) target = $region36
        $region35: #{tpu_custom_call.1} parent=31 // pred_region
          %182 = dma.done %s175, 256
        $region36: #{tpu_custom_call.1} parent=31 // pred_fallthru
          _
        %s183 = sand.u32 %s40, 1
        %s184 = scalar_lea.sflag [#allocation3], %s183
        %s185 = sand.u32 %s40, 1
        %s186 = smul.addr %s185, 16
        %s187 = scalar_lea.vmem [#allocation2], %s186
        %p188 = pneg %p53
        %p189 = pneg %p50
        %p190 = pneg %p74
        %p191 = pneg %p71
        %p192 = pneg %p95
        %p193 = pneg %p92
        %p194 = pneg %p123
        %p195 = pneg %p120
        %s196 = sand.u32 %s110, 1
        %s197 = scalar_lea.sflag [#allocation4], %s196
        %s198 = sand.u32 %s110, 1
        %s199 = smul.addr %s198, 8
        %s200 = scalar_lea.vmem [#allocation5], %s199
        %s201 = smul.u32 %s25, 128
        %v202 = vld [vmem:[%s1] sm:$0xff]
        %s203 = sshra.s32 %s201, 7
        %s204 = sand.u32 %s201, 127
        %s205 = smul.addr %s203, 8
        %s206 = scalar_lea.vmem %s178, %s205 [#allocation2]
        %v207 = vld [vmem:[%s206] sm:$0xff]
        %v208 = vld [vmem:[%s2] sm:$0xff]
        %210 = vset.pattern.permute.xlu0 0
        %211 = vperm.xlu0 %210, %v208
        %v212 = vpop.permute.xlu0 %211
        %vm214 = vcmask 64512
        %v216 = vsel %vm214, %v202, 0
        %218 = vmatprep.subr.mxu0 0.0
        %219 = vmatpush1.msra.mxu0 0.0
        %220 = vmatprep.subr.mxu0 0.0
        %221 = vmatpush1.msra.mxu0 0.0
        %222 = vmatprep.subr.mxu0 0.0
        %223 = vmatpush1.msra.mxu0 0.0
        %224 = vmatprep.subr.mxu0 0.0
        %225 = vmatpush1.msra.mxu0 0.0
        %226 = vmatprep.subr.mxu0 0.0
        %227 = vmatpush1.msra.mxu0 0.0
        %228 = vmatprep.subr.mxu0 0.0
        %229 = vmatpush1.msra.mxu0 0.0
        %230 = vmatprep.subr.mxu0 0.0
        %231 = vmatpush1.msra.mxu0 0.0
        %232 = vmatprep.subr.mxu0 0.0
        %233 = vmatpush1.msra.mxu0 0.0
        %234 = vmatprep.subr.mxu0 0.0
        %235 = vmatpush1.msra.mxu0 0.0
        %236 = vmatprep.subr.mxu0 0.0
        %237 = vmatpush1.msra.mxu0 0.0
        %238 = vmatprep.subr.mxu0 0.0
        %239 = vmatpush1.msra.mxu0 0.0
        %240 = vmatprep.subr.mxu0 0.0
        %241 = vmatpush1.msra.mxu0 0.0
        %242 = vmatprep.subr.mxu0 0.0
        %243 = vmatpush1.msra.mxu0 0.0
        %244 = vmatprep.subr.mxu0 0.0
        %245 = vmatpush1.msra.mxu0 0.0
        %246 = vmatprep.subr.mxu0 0.0
        %247 = vmatpush1.msra.mxu0 0.0
        %248 = vmatprep.subr.mxu0 0.0
        %249 = vmatpush1.msra.mxu0 %v207
        %250 = vmatprep.subr.mxu0 0.0
        %251 = vmatpush2.msra.mxu0 0.0
        %252 = vmatprep.subr.mxu0 0.0
        %253 = vmatpush2.msra.mxu0 0.0
        %254 = vmatprep.subr.mxu0 0.0
        %255 = vmatpush2.msra.mxu0 0.0
        %256 = vmatprep.subr.mxu0 0.0
        %257 = vmatpush2.msra.mxu0 0.0
        %258 = vmatprep.subr.mxu0 0.0
        %259 = vmatpush2.msra.mxu0 0.0
        %260 = vmatprep.subr.mxu0 0.0
        %261 = vmatpush2.msra.mxu0 0.0
        %262 = vmatprep.subr.mxu0 0.0
        %263 = vmatpush2.msra.mxu0 0.0
        %264 = vmatprep.subr.mxu0 0.0
        %265 = vmatpush2.msra.mxu0 0.0
        %266 = vmatprep.subr.mxu0 0.0
        %267 = vmatpush2.msra.mxu0 0.0
        %268 = vmatprep.subr.mxu0 0.0
        %269 = vmatpush2.msra.mxu0 0.0
        %270 = vmatprep.subr.mxu0 0.0
        %271 = vmatpush2.msra.mxu0 0.0
        %272 = vmatprep.subr.mxu0 0.0
        %273 = vmatpush2.msra.mxu0 0.0
        %274 = vmatprep.subr.mxu0 0.0
        %275 = vmatpush2.msra.mxu0 0.0
        %276 = vmatprep.subr.mxu0 0.0
        %277 = vmatpush2.msra.mxu0 0.0
        %278 = vmatprep.subr.mxu0 0.0
        %279 = vmatpush2.msra.mxu0 0.0
        %280 = vmatprep.subr.mxu0 0.0
        %281 = vmatpush2.msra.mxu0 0.0
        %282 = vmatprep.mubr.f32.mxu0 0.0
        %283 = vmatmul.mubr.f32.gmra.mxu0 %v216
        %v284 = vpop.f32.mrf.mxu0
        %v285 = vadd.f32 %v212, %v284
        %v286 = vpop.f32.mrf.mxu0
        %287 = vdwg.mxu0
        %vm288 = vcmp.gt.f32.partialorder %v285, 0.0
        %s289 = scalar_lea.vmem %s2, 8
        %v290 = vld [vmem:[%s289] sm:$0xff]
        %292 = vset.pattern.permute.xlu0 0
        %293 = vperm.xlu0 %292, %v290
        %v294 = vpop.permute.xlu0 %293
        %v296 = vmul.f32 %v285, %v294
        %v297 = vsel %vm288, %v285, %v296
        %298 = vst [vmem:[%s200] sm:$0xff] %v297
        %s299 = sand.u32 %s110, 1
        %s300 = scalar_lea.sflag [#allocation4], %s299
        %s301 = sand.u32 %s110, 1
        %s302 = smul.addr %s301, 8
        %s303 = scalar_lea.vmem [#allocation5], %s302
        // Predicated region
        $region37: #{tpu_custom_call.1} parent=31 // pred_check
          %p304 = pneg %p120
        $region38: #{tpu_custom_call.1} parent=31 // pred_check_branch
          %306 = sbr.rel (%p304) target = $region40
        $region39: #{tpu_custom_call.1} parent=31 // pred_region
          %s308 = ssub.s32 128, 128
          %309 = vsyncadd %s300, %s308
          %s310 = smul.addr %s24, 2
          %s311 = sadd.s32 %s25, %s310
          %s312 = smul.addr %s311, 128
          %s313 = scalar_lea.hbm %s3, %s312
          %s315 = sshll.u32 %s303, 4
          %s316 = int_to_ptr.vmem [resolvable:$true] %s315
          %318 = dma.vmem_to_hbm [thread:$0]  %s316, 128, %s313, %s300
        $region40: #{tpu_custom_call.1} parent=31 // pred_fallthru
          _
      $region32: #{tpu_custom_call.1} parent=5 // pred_fallthru
        _
      %p319 = scmp.le.s32.totalorder 2, %s15
      // Predicated region
      $region41: #{tpu_custom_call.1} parent=5 // pred_check
        %p320 = pneg %p319
      $region42: #{tpu_custom_call.1} parent=5 // pred_check_branch
        %322 = sbr.rel (%p320) target = $region44
      $region43: #{tpu_custom_call.1} parent=5 // pred_region
        %s323 = ssub.s32 %s15, 2
        // Predicated region
        $region45: #{tpu_custom_call.1} parent=43 // pred_check
          %p324 = pneg %p126
        $region46: #{tpu_custom_call.1} parent=43 // pred_check_branch
          %326 = sbr.rel (%p324) target = $region48
        $region47: #{tpu_custom_call.1} parent=43 // pred_region
          %s327 = sand.u32 %s111, 1
          %s328 = scalar_lea.sflag [#allocation4], %s327
          %s329 = sand.u32 %s111, 1
          %s330 = smul.addr %s329, 8
          %s331 = scalar_lea.vmem [#allocation5], %s330
          %332 = dma.done %s328, 128
        $region48: #{tpu_custom_call.1} parent=43 // pred_fallthru
          _
      $region44: #{tpu_custom_call.1} parent=5 // pred_fallthru
        _
    $region6: #{tpu_custom_call.1} parent=1 // loop_footer
      %s19 = sadd.s32 1, %s15
    $region7: #{tpu_custom_call.1} parent=1 // loop_footer_branch
      %14 = sbr.rel target = $region3
    $region8: #{tpu_custom_call.1} parent=1 // loop_exit
      _
    %333 = vsyncpa [#allocation3], 1
    %s334 = scalar_lea.sflag [#allocation3], 1
    %335 = vsyncpa %s334, 1
    %336 = vsyncpa [#allocation4], 1
    %s337 = scalar_lea.sflag [#allocation4], 1
    %338 = vsyncpa %s337, 1

</llo_original>
